<compile_context>
chip_gen: v5e
topology: v5e:2x2
jax: 0.10.0
libtpu: 0.0.40
codegen_flags: <defaults>
</compile_context>

<pallas_src>
import jax
import jax.numpy as jnp
from jax.experimental import pallas as pl
from jax.experimental.pallas import tpu as pltpu

NEG_SLOPE = 0.01        # nn.LeakyReLU() default negative_slope
MAX_TILE_HW = 8192      # max pixels per spatial tile (lane axis)
COUT_ALIGN = 16         # bf16 sublane pack; real channel counts are all <= 64


def _round_up(x, m):
    return (x + m - 1) // m * m


def _commonsense_kernel(x_ref, *refs):
    """Fused 1x1-conv stack for one (batch, spatial) tile.

    x_ref : (1, C_in, T)  activation tile -- channels on sublanes, pixels on lanes
    refs  : 7 weight refs (cout_pad_l, cin_pad_l) bf16, then o_ref (1, 1, T)
    """
    w_refs = refs[:-1]
    o_ref = refs[-1]
    n_layers = len(w_refs)

    act = x_ref[0].astype(jnp.bfloat16)          # (C_in, T)
    for l, w_ref in enumerate(w_refs):
        # (cout_pad, cin_pad) @ (cin_pad, T) on the MXU, f32 accumulation.
        h = jnp.dot(w_ref[...], act, preferred_element_type=jnp.float32)
        if l < n_layers - 1:
            # Downcast first, then LeakyReLU as a 2-op max in bf16 (VPU).
            hb = h.astype(jnp.bfloat16)
            act = jnp.maximum(hb, hb * NEG_SLOPE)
        else:
            # Final conv has no activation; the real output is padded row 0.
            o_ref[...] = h[0:1, :].astype(o_ref.dtype).reshape(o_ref.shape)


def similarity_measure1_forward(x, weights):
    """x: (N, 2*in_channel, H, W); weights: list of 7 (Cout_l, Cin_l) arrays."""
    N, C_in, H, W = x.shape
    HW = H * W

    couts = [w.shape[0] for w in weights]
    cins = [w.shape[1] for w in weights]
    assert cins[0] == C_in, "first conv in_channels must match input channels"
    for l in range(1, len(weights)):
        assert cins[l] == couts[l - 1], "conv chain channel mismatch"

    # Pad output-channel dims to the bf16 sublane pack (16), not 128: every
    # layer already fits a single MXU pass, so bigger padding only inflates
    # the intermediate activations.  Each layer's contraction dim is the
    # previous layer's padded cout (first layer keeps the real C_in).
    cout_pad = [_round_up(c, COUT_ALIGN) for c in couts]
    cin_pad = [C_in] + cout_pad[:-1]

    w_padded = []
    for w, cop, cip in zip(weights, cout_pad, cin_pad):
        wp = jnp.zeros((cop, cip), jnp.bfloat16)
        wp = wp.at[: w.shape[0], : w.shape[1]].set(w.astype(jnp.bfloat16))
        w_padded.append(wp)

    # Balanced spatial tiling: pixels on the lane axis, pad < 128 per tile.
    n_tiles = -(-HW // MAX_TILE_HW)
    tile_hw = _round_up(-(-HW // n_tiles), 128)
    hw_pad = n_tiles * tile_hw

    x3 = x.reshape(N, C_in, HW)
    if hw_pad != HW:
        x3 = jnp.pad(x3, ((0, 0), (0, 0), (0, hw_pad - HW)))

    grid = (N, n_tiles)

    in_specs = [pl.BlockSpec((1, C_in, tile_hw), lambda n, t: (n, 0, t))]
    for cop, cip in zip(cout_pad, cin_pad):
        # Constant block index -> each weight is DMA'd into VMEM once and stays
        # resident for the whole grid (total < ~50 KB after the padding fix).
        in_specs.append(pl.BlockSpec((cop, cip), lambda n, t: (0, 0)))

    out_specs = pl.BlockSpec((1, 1, tile_hw), lambda n, t: (n, 0, t))

    out = pl.pallas_call(
        _commonsense_kernel,
        grid=grid,
        in_specs=in_specs,
        out_specs=out_specs,
        out_shape=jax.ShapeDtypeStruct((N, 1, hw_pad), jnp.float32),
        compiler_params=pltpu.CompilerParams(
            dimension_semantics=("parallel", "parallel"),
            vmem_limit_bytes=32 * 1024 * 1024,
        ),
    )(x3, *w_padded)

    return out[:, :, :HW].reshape(N, 1, H, W)


def init_weights(key, in_channel):
    """Mimic the module's kaiming_normal_(mode='fan_out') init for 1x1 convs."""
    cins = [2 * in_channel, in_channel, in_channel // 2, in_channel // 4,
            in_channel // 8, in_channel // 16, in_channel // 32]
    couts = [in_channel, in_channel // 2, in_channel // 4, in_channel // 8,
             in_channel // 16, in_channel // 32, 1]
    ws = []
    for ci, co in zip(cins, couts):
        key, sub = jax.random.split(key)
        std = (2.0 / co) ** 0.5  # fan_out = out_channels * 1 * 1
        ws.append(std * jax.random.normal(sub, (co, ci), jnp.float32))
    return ws


def reference_forward(x, weights):
    """Pure-JAX f32 reference (matches the PyTorch forward)."""
    N, C, H, W = x.shape
    h = x.reshape(N, C, H * W).astype(jnp.float32)
    for i, w in enumerate(weights):
        h = jnp.einsum("oc,nct->not", w.astype(jnp.float32), h)
        if i < len(weights) - 1:
            h = jnp.where(h >= 0.0, h, NEG_SLOPE * h)
    return h.reshape(N, -1, H, W)


if __name__ == "__main__":
    # The module's channel chain (in_channel // 32 etc.) implies in_channel >= 32.
    in_channel = 32
    batch, H, W = 2, 16, 16

    key = jax.random.PRNGKey(0)
    kx, kw = jax.random.split(key)
    x = jax.random.normal(kx, (batch, 2 * in_channel, H, W), jnp.float32)
    weights = init_weights(kw, in_channel)

    fwd = jax.jit(similarity_measure1_forward)
    out = jax.block_until_ready(fwd(x, weights))

    assert out.shape == (batch, 1, H, W), out.shape
    ref = reference_forward(x, weights)
    rel_err = float(jnp.max(jnp.abs(out - ref)) / (jnp.max(jnp.abs(ref)) + 1e-6))
    assert rel_err < 0.06, f"numerics mismatch vs f32 reference: rel_err={rel_err}"

    print("KERNEL_OK")
</pallas_src>

<mosaic_0001>
module attributes {stable_mosaic.version = 11 : i64} {
  func.func @_commonsense_kernel(%arg0: i32, %arg1: i32, %arg2: memref<1x64x256xf32, #tpu.memory_space<vmem>>, %arg3: memref<32x64xbf16, #tpu.memory_space<vmem>>, %arg4: memref<16x32xbf16, #tpu.memory_space<vmem>>, %arg5: memref<16x16xbf16, #tpu.memory_space<vmem>>, %arg6: memref<16x16xbf16, #tpu.memory_space<vmem>>, %arg7: memref<16x16xbf16, #tpu.memory_space<vmem>>, %arg8: memref<16x16xbf16, #tpu.memory_space<vmem>>, %arg9: memref<16x16xbf16, #tpu.memory_space<vmem>>, %arg10: memref<1x1x256xf32, #tpu.memory_space<vmem>>) attributes {dimension_semantics = [#tpu.dimension_semantics<parallel>, #tpu.dimension_semantics<parallel>], iteration_bounds = array<i64: 2, 1>, scalar_prefetch = 0 : i64, scratch_operands = 0 : i64, tpu.core_type = #tpu.core_type<tc>, window_params = [{transform_indices = @transform_0, window_bounds = array<i64: 1, 64, 256>}, {pipeline_mode = #tpu.pipeline_mode<synchronous>, transform_indices = @transform_1, window_bounds = array<i64: 32, 64>}, {pipeline_mode = #tpu.pipeline_mode<synchronous>, transform_indices = @transform_2, window_bounds = array<i64: 16, 32>}, {pipeline_mode = #tpu.pipeline_mode<synchronous>, transform_indices = @transform_3, window_bounds = array<i64: 16, 16>}, {pipeline_mode = #tpu.pipeline_mode<synchronous>, transform_indices = @transform_4, window_bounds = array<i64: 16, 16>}, {pipeline_mode = #tpu.pipeline_mode<synchronous>, transform_indices = @transform_5, window_bounds = array<i64: 16, 16>}, {pipeline_mode = #tpu.pipeline_mode<synchronous>, transform_indices = @transform_6, window_bounds = array<i64: 16, 16>}, {pipeline_mode = #tpu.pipeline_mode<synchronous>, transform_indices = @transform_7, window_bounds = array<i64: 16, 16>}, {transform_indices = @transform_8, window_bounds = array<i64: 1, 1, 256>}]} {
    %c0 = arith.constant 0 : index
    %c0_0 = arith.constant 0 : index
    %c0_1 = arith.constant 0 : index
    %0 = vector.load %arg2[%c0, %c0_0, %c0_1] : memref<1x64x256xf32, #tpu.memory_space<vmem>>, vector<1x64x256xf32>
    %1 = vector.shape_cast %0 : vector<1x64x256xf32> to vector<64x256xf32>
    %2 = arith.truncf %1 : vector<64x256xf32> to vector<64x256xbf16>
    %c0_2 = arith.constant 0 : index
    %c0_3 = arith.constant 0 : index
    %3 = vector.load %arg3[%c0_2, %c0_3] : memref<32x64xbf16, #tpu.memory_space<vmem>>, vector<32x64xbf16>
    %cst = arith.constant dense<0.000000e+00> : vector<32x256xf32>
    %4 = tpu.matmul %3, %2, %cst {dimension_numbers = #tpu.dot_dimension_numbers<[1], [0], [0], [1], [0, 0, 1, 1], [], []>} : vector<32x64xbf16>, vector<64x256xbf16>, vector<32x256xf32> -> vector<32x256xf32>
    %5 = arith.truncf %4 : vector<32x256xf32> to vector<32x256xbf16>
    %cst_4 = arith.constant 1.000980e-02 : bf16
    %6 = vector.broadcast %cst_4 : bf16 to vector<32x256xbf16>
    %7 = arith.mulf %5, %6 : vector<32x256xbf16>
    %8 = arith.maximumf %5, %7 : vector<32x256xbf16>
    %c0_5 = arith.constant 0 : index
    %c0_6 = arith.constant 0 : index
    %9 = vector.load %arg4[%c0_5, %c0_6] : memref<16x32xbf16, #tpu.memory_space<vmem>>, vector<16x32xbf16>
    %cst_7 = arith.constant dense<0.000000e+00> : vector<16x256xf32>
    %10 = tpu.matmul %9, %8, %cst_7 {dimension_numbers = #tpu.dot_dimension_numbers<[1], [0], [0], [1], [0, 0, 1, 1], [], []>} : vector<16x32xbf16>, vector<32x256xbf16>, vector<16x256xf32> -> vector<16x256xf32>
    %11 = arith.truncf %10 : vector<16x256xf32> to vector<16x256xbf16>
    %cst_8 = arith.constant 1.000980e-02 : bf16
    %12 = vector.broadcast %cst_8 : bf16 to vector<16x256xbf16>
    %13 = arith.mulf %11, %12 : vector<16x256xbf16>
    %14 = arith.maximumf %11, %13 : vector<16x256xbf16>
    %c0_9 = arith.constant 0 : index
    %c0_10 = arith.constant 0 : index
    %15 = vector.load %arg5[%c0_9, %c0_10] : memref<16x16xbf16, #tpu.memory_space<vmem>>, vector<16x16xbf16>
    %cst_11 = arith.constant dense<0.000000e+00> : vector<16x256xf32>
    %16 = tpu.matmul %15, %14, %cst_11 {dimension_numbers = #tpu.dot_dimension_numbers<[1], [0], [0], [1], [0, 0, 1, 1], [], []>} : vector<16x16xbf16>, vector<16x256xbf16>, vector<16x256xf32> -> vector<16x256xf32>
    %17 = arith.truncf %16 : vector<16x256xf32> to vector<16x256xbf16>
    %cst_12 = arith.constant 1.000980e-02 : bf16
    %18 = vector.broadcast %cst_12 : bf16 to vector<16x256xbf16>
    %19 = arith.mulf %17, %18 : vector<16x256xbf16>
    %20 = arith.maximumf %17, %19 : vector<16x256xbf16>
    %c0_13 = arith.constant 0 : index
    %c0_14 = arith.constant 0 : index
    %21 = vector.load %arg6[%c0_13, %c0_14] : memref<16x16xbf16, #tpu.memory_space<vmem>>, vector<16x16xbf16>
    %cst_15 = arith.constant dense<0.000000e+00> : vector<16x256xf32>
    %22 = tpu.matmul %21, %20, %cst_15 {dimension_numbers = #tpu.dot_dimension_numbers<[1], [0], [0], [1], [0, 0, 1, 1], [], []>} : vector<16x16xbf16>, vector<16x256xbf16>, vector<16x256xf32> -> vector<16x256xf32>
    %23 = arith.truncf %22 : vector<16x256xf32> to vector<16x256xbf16>
    %cst_16 = arith.constant 1.000980e-02 : bf16
    %24 = vector.broadcast %cst_16 : bf16 to vector<16x256xbf16>
    %25 = arith.mulf %23, %24 : vector<16x256xbf16>
    %26 = arith.maximumf %23, %25 : vector<16x256xbf16>
    %c0_17 = arith.constant 0 : index
    %c0_18 = arith.constant 0 : index
    %27 = vector.load %arg7[%c0_17, %c0_18] : memref<16x16xbf16, #tpu.memory_space<vmem>>, vector<16x16xbf16>
    %cst_19 = arith.constant dense<0.000000e+00> : vector<16x256xf32>
    %28 = tpu.matmul %27, %26, %cst_19 {dimension_numbers = #tpu.dot_dimension_numbers<[1], [0], [0], [1], [0, 0, 1, 1], [], []>} : vector<16x16xbf16>, vector<16x256xbf16>, vector<16x256xf32> -> vector<16x256xf32>
    %29 = arith.truncf %28 : vector<16x256xf32> to vector<16x256xbf16>
    %cst_20 = arith.constant 1.000980e-02 : bf16
    %30 = vector.broadcast %cst_20 : bf16 to vector<16x256xbf16>
    %31 = arith.mulf %29, %30 : vector<16x256xbf16>
    %32 = arith.maximumf %29, %31 : vector<16x256xbf16>
    %c0_21 = arith.constant 0 : index
    %c0_22 = arith.constant 0 : index
    %33 = vector.load %arg8[%c0_21, %c0_22] : memref<16x16xbf16, #tpu.memory_space<vmem>>, vector<16x16xbf16>
    %cst_23 = arith.constant dense<0.000000e+00> : vector<16x256xf32>
    %34 = tpu.matmul %33, %32, %cst_23 {dimension_numbers = #tpu.dot_dimension_numbers<[1], [0], [0], [1], [0, 0, 1, 1], [], []>} : vector<16x16xbf16>, vector<16x256xbf16>, vector<16x256xf32> -> vector<16x256xf32>
    %35 = arith.truncf %34 : vector<16x256xf32> to vector<16x256xbf16>
    %cst_24 = arith.constant 1.000980e-02 : bf16
    %36 = vector.broadcast %cst_24 : bf16 to vector<16x256xbf16>
    %37 = arith.mulf %35, %36 : vector<16x256xbf16>
    %38 = arith.maximumf %35, %37 : vector<16x256xbf16>
    %c0_25 = arith.constant 0 : index
    %c0_26 = arith.constant 0 : index
    %39 = vector.load %arg9[%c0_25, %c0_26] : memref<16x16xbf16, #tpu.memory_space<vmem>>, vector<16x16xbf16>
    %cst_27 = arith.constant dense<0.000000e+00> : vector<16x256xf32>
    %40 = tpu.matmul %39, %38, %cst_27 {dimension_numbers = #tpu.dot_dimension_numbers<[1], [0], [0], [1], [0, 0, 1, 1], [], []>} : vector<16x16xbf16>, vector<16x256xbf16>, vector<16x256xf32> -> vector<16x256xf32>
    %41 = vector.extract_strided_slice %40 {offsets = [0, 0], sizes = [1, 256], strides = [1, 1]} : vector<16x256xf32> to vector<1x256xf32>
    %42 = vector.shape_cast %41 : vector<1x256xf32> to vector<1x1x256xf32>
    %c0_28 = arith.constant 0 : index
    %c0_29 = arith.constant 0 : index
    %c0_30 = arith.constant 0 : index
    %43 = vector.load %arg10[%c0_28, %c0_29, %c0_30] : memref<1x1x256xf32, #tpu.memory_space<vmem>>, vector<1x1x256xf32>
    tpu.vector_store %arg10[%c0_28, %c0_29, %c0_30], %42 {strides = array<i32>} : memref<1x1x256xf32, #tpu.memory_space<vmem>>, vector<1x1x256xf32>,
    return
  }
  func.func @transform_0(%arg0: i32, %arg1: i32) -> (i32, i32, i32) {
    %c0_i32 = arith.constant 0 : i32
    %c0_i32_0 = arith.constant 0 : i32
    return %arg0, %c0_i32, %arg1 : i32, i32, i32
  }
  func.func @transform_1(%arg0: i32, %arg1: i32) -> (i32, i32) {
    %c0_i32 = arith.constant 0 : i32
    %c0_i32_0 = arith.constant 0 : i32
    %c0_i32_1 = arith.constant 0 : i32
    return %c0_i32, %c0_i32_0 : i32, i32
  }
  func.func @transform_2(%arg0: i32, %arg1: i32) -> (i32, i32) {
    %c0_i32 = arith.constant 0 : i32
    %c0_i32_0 = arith.constant 0 : i32
    %c0_i32_1 = arith.constant 0 : i32
    return %c0_i32, %c0_i32_0 : i32, i32
  }
  func.func @transform_3(%arg0: i32, %arg1: i32) -> (i32, i32) {
    %c0_i32 = arith.constant 0 : i32
    %c0_i32_0 = arith.constant 0 : i32
    %c0_i32_1 = arith.constant 0 : i32
    return %c0_i32, %c0_i32_0 : i32, i32
  }
  func.func @transform_4(%arg0: i32, %arg1: i32) -> (i32, i32) {
    %c0_i32 = arith.constant 0 : i32
    %c0_i32_0 = arith.constant 0 : i32
    %c0_i32_1 = arith.constant 0 : i32
    return %c0_i32, %c0_i32_0 : i32, i32
  }
  func.func @transform_5(%arg0: i32, %arg1: i32) -> (i32, i32) {
    %c0_i32 = arith.constant 0 : i32
    %c0_i32_0 = arith.constant 0 : i32
    %c0_i32_1 = arith.constant 0 : i32
    return %c0_i32, %c0_i32_0 : i32, i32
  }
  func.func @transform_6(%arg0: i32, %arg1: i32) -> (i32, i32) {
    %c0_i32 = arith.constant 0 : i32
    %c0_i32_0 = arith.constant 0 : i32
    %c0_i32_1 = arith.constant 0 : i32
    return %c0_i32, %c0_i32_0 : i32, i32
  }
  func.func @transform_7(%arg0: i32, %arg1: i32) -> (i32, i32) {
    %c0_i32 = arith.constant 0 : i32
    %c0_i32_0 = arith.constant 0 : i32
    %c0_i32_1 = arith.constant 0 : i32
    return %c0_i32, %c0_i32_0 : i32, i32
  }
  func.func @transform_8(%arg0: i32, %arg1: i32) -> (i32, i32, i32) {
    %c0_i32 = arith.constant 0 : i32
    %c0_i32_0 = arith.constant 0 : i32
    return %arg0, %c0_i32, %arg1 : i32, i32, i32
  }
}

</mosaic_0001>

<llo_original>
// kernel: similarity_measure1_forward.1
$region0: #{similarity_measure1_forward.1}
  #allocation0 [shape = 'u32[]', space=smem, size = 0x4, offset = 0x4, fixed_abs, tag = 'smem constant byte address 0x4 - core index']
  #allocation1 [shape = 'u32[72,128]{1,0:T(1,128)}', space=vmem, size = 0x9000, scoped, tag = 'internal scratch']
  %s0 = inlined_call_operand.vmem [shape: f32[2,64,256], index: 0, kind: input, shape index: {}]
  %s1 = inlined_call_operand.vmem [shape: bf16[32,64], index: 1, kind: input, shape index: {}]
  %s2 = inlined_call_operand.vmem [shape: bf16[16,32], index: 2, kind: input, shape index: {}]
  %s3 = inlined_call_operand.vmem [shape: bf16[16,16], index: 3, kind: input, shape index: {}]
  %s4 = inlined_call_operand.vmem [shape: bf16[16,16], index: 4, kind: input, shape index: {}]
  %s5 = inlined_call_operand.vmem [shape: bf16[16,16], index: 5, kind: input, shape index: {}]
  %s6 = inlined_call_operand.vmem [shape: bf16[16,16], index: 6, kind: input, shape index: {}]
  %s7 = inlined_call_operand.vmem [shape: bf16[16,16], index: 7, kind: input, shape index: {}]
  %s8 = inlined_call_operand.vmem [shape: f32[2,1,256], index: 8, kind: output, shape index: {}]
  %s9 = sld [smem:[#allocation0]]
  $region65: #{similarity_measure1_forward.1} parent=0
    _
  %s11 = ssub.s32 1, %s9
  %s12 = scalar_select 0, %s11, %s9
  loop: start=0, step=1, limit=4
  $region2: #{similarity_measure1_forward.1} parent=0 // loop_pre_header
    _
  $region3: #{similarity_measure1_forward.1} parent=0 // loop_header
    %s14 = sphi 0, %s18
    %p15 = scmp.ge.s32.totalorder %s14, 4
    %s21 = sphi 0, %s33
    %s22 = sphi 0, %s29
    %s23 = sphi 0, %s21
    %s24 = sphi 0, %s22
    %s25 = sphi 0, %s23
    %s26 = sphi 0, %s24
    %s38 = sphi 0, %s40
    %s41 = sphi 0, %s38
    %s42 = sphi 0, %s41
    %s58 = sphi 0, %s42
    %s62 = sphi 0, %s62
    %s64 = sphi 0, %s62
    %s65 = sphi 0, %s64
    %s79 = sphi 0, %s65
    %s83 = sphi 0, %s83
    %s85 = sphi 0, %s83
    %s86 = sphi 0, %s85
    %s100 = sphi 0, %s86
    %s104 = sphi 0, %s104
    %s106 = sphi 0, %s104
    %s107 = sphi 0, %s106
    %s121 = sphi 0, %s107
    %s125 = sphi 0, %s125
    %s127 = sphi 0, %s125
    %s128 = sphi 0, %s127
    %s142 = sphi 0, %s128
    %s146 = sphi 0, %s146
    %s148 = sphi 0, %s146
    %s149 = sphi 0, %s148
    %s163 = sphi 0, %s149
    %s167 = sphi 0, %s167
    %s169 = sphi 0, %s167
    %s170 = sphi 0, %s169
    %s184 = sphi 0, %s170
    %s188 = sphi 0, %s188
    %s190 = sphi 0, %s188
    %s191 = sphi 0, %s190
    %s205 = sphi 0, %s191
    %s213 = sphi 0, %s215
    %s216 = sphi 0, %s213
    %s217 = sphi 0, %s216
    %s233 = sphi 0, %s217
  $region4: #{similarity_measure1_forward.1} parent=0 // loop_header_branch
    %17 = sbr.rel (%p15) target = $region8
  $region5: #{similarity_measure1_forward.1} parent=0 // loop_body
    %s19 = ssub.s32 %s14, 1
    %s20 = ssub.s32 %s14, 2
    %s27 = sadd.s32 1, %s22
    %p28 = scmp.ge.s32.totalorder %s27, 1
    %s29 = scalar_select %p28, 0, %s27
    %s30 = sadd.s32 1, %s21
    %s31 = scalar_select %p28, %s30, %s21
    %p32 = scmp.ge.s32.totalorder %s31, 2
    %s33 = scalar_select %p32, 0, %s31
    %s34 = ssub.s32 %s21, %s33
    %s35 = ssub.s32 %s22, %s29
    %s36 = sor.u32 %s34, %s35
    %p37 = scmp.eq.s32.totalorder %s36, 0
    %s39 = sadd.s32 %s38, 1
    %s40 = scalar_select %p37, %s38, %s39
    %p43 = pneg %p37
    %p44 = scmp.eq.s32.totalorder %s14, 1
    %p45 = por %p43, %p44
    %p46 = scmp.ne.s32.totalorder %s38, %s41
    %p47 = scmp.eq.s32.totalorder %s14, 0
    %p48 = por %p46, %p47
    %p49 = scmp.ne.s32.totalorder %s38, %s41
    %p50 = scmp.eq.s32.totalorder %s19, 1
    %p51 = por %p49, %p50
    %p52 = scmp.ne.s32.totalorder %s41, %s42
    %p53 = scmp.eq.s32.totalorder %s19, 0
    %p54 = por %p52, %p53
    %p55 = scmp.ne.s32.totalorder %s41, %s42
    %p56 = scmp.eq.s32.totalorder %s20, 1
    %p57 = por %p55, %p56
    %p59 = scmp.ne.s32.totalorder %s42, %s58
    %p60 = scmp.eq.s32.totalorder %s20, 0
    %p61 = por %p59, %p60
    %s63 = sadd.s32 %s62, 1
    %p66 = scmp.eq.s32.totalorder %s14, 1
    %p67 = scmp.ne.s32.totalorder %s62, %s64
    %p68 = scmp.eq.s32.totalorder %s14, 0
    %p69 = por %p67, %p68
    %p70 = scmp.ne.s32.totalorder %s62, %s64
    %p71 = scmp.eq.s32.totalorder %s19, 1
    %p72 = por %p70, %p71
    %p73 = scmp.ne.s32.totalorder %s64, %s65
    %p74 = scmp.eq.s32.totalorder %s19, 0
    %p75 = por %p73, %p74
    %p76 = scmp.ne.s32.totalorder %s64, %s65
    %p77 = scmp.eq.s32.totalorder %s20, 1
    %p78 = por %p76, %p77
    %p80 = scmp.ne.s32.totalorder %s65, %s79
    %p81 = scmp.eq.s32.totalorder %s20, 0
    %p82 = por %p80, %p81
    %s84 = sadd.s32 %s83, 1
    %p87 = scmp.eq.s32.totalorder %s14, 1
    %p88 = scmp.ne.s32.totalorder %s83, %s85
    %p89 = scmp.eq.s32.totalorder %s14, 0
    %p90 = por %p88, %p89
    %p91 = scmp.ne.s32.totalorder %s83, %s85
    %p92 = scmp.eq.s32.totalorder %s19, 1
    %p93 = por %p91, %p92
    %p94 = scmp.ne.s32.totalorder %s85, %s86
    %p95 = scmp.eq.s32.totalorder %s19, 0
    %p96 = por %p94, %p95
    %p97 = scmp.ne.s32.totalorder %s85, %s86
    %p98 = scmp.eq.s32.totalorder %s20, 1
    %p99 = por %p97, %p98
    %p101 = scmp.ne.s32.totalorder %s86, %s100
    %p102 = scmp.eq.s32.totalorder %s20, 0
    %p103 = por %p101, %p102
    %s105 = sadd.s32 %s104, 1
    %p108 = scmp.eq.s32.totalorder %s14, 1
    %p109 = scmp.ne.s32.totalorder %s104, %s106
    %p110 = scmp.eq.s32.totalorder %s14, 0
    %p111 = por %p109, %p110
    %p112 = scmp.ne.s32.totalorder %s104, %s106
    %p113 = scmp.eq.s32.totalorder %s19, 1
    %p114 = por %p112, %p113
    %p115 = scmp.ne.s32.totalorder %s106, %s107
    %p116 = scmp.eq.s32.totalorder %s19, 0
    %p117 = por %p115, %p116
    %p118 = scmp.ne.s32.totalorder %s106, %s107
    %p119 = scmp.eq.s32.totalorder %s20, 1
    %p120 = por %p118, %p119
    %p122 = scmp.ne.s32.totalorder %s107, %s121
    %p123 = scmp.eq.s32.totalorder %s20, 0
    %p124 = por %p122, %p123
    %s126 = sadd.s32 %s125, 1
    %p129 = scmp.eq.s32.totalorder %s14, 1
    %p130 = scmp.ne.s32.totalorder %s125, %s127
    %p131 = scmp.eq.s32.totalorder %s14, 0
    %p132 = por %p130, %p131
    %p133 = scmp.ne.s32.totalorder %s125, %s127
    %p134 = scmp.eq.s32.totalorder %s19, 1
    %p135 = por %p133, %p134
    %p136 = scmp.ne.s32.totalorder %s127, %s128
    %p137 = scmp.eq.s32.totalorder %s19, 0
    %p138 = por %p136, %p137
    %p139 = scmp.ne.s32.totalorder %s127, %s128
    %p140 = scmp.eq.s32.totalorder %s20, 1
    %p141 = por %p139, %p140
    %p143 = scmp.ne.s32.totalorder %s128, %s142
    %p144 = scmp.eq.s32.totalorder %s20, 0
    %p145 = por %p143, %p144
    %s147 = sadd.s32 %s146, 1
    %p150 = scmp.eq.s32.totalorder %s14, 1
    %p151 = scmp.ne.s32.totalorder %s146, %s148
    %p152 = scmp.eq.s32.totalorder %s14, 0
    %p153 = por %p151, %p152
    %p154 = scmp.ne.s32.totalorder %s146, %s148
    %p155 = scmp.eq.s32.totalorder %s19, 1
    %p156 = por %p154, %p155
    %p157 = scmp.ne.s32.totalorder %s148, %s149
    %p158 = scmp.eq.s32.totalorder %s19, 0
    %p159 = por %p157, %p158
    %p160 = scmp.ne.s32.totalorder %s148, %s149
    %p161 = scmp.eq.s32.totalorder %s20, 1
    %p162 = por %p160, %p161
    %p164 = scmp.ne.s32.totalorder %s149, %s163
    %p165 = scmp.eq.s32.totalorder %s20, 0
    %p166 = por %p164, %p165
    %s168 = sadd.s32 %s167, 1
    %p171 = scmp.eq.s32.totalorder %s14, 1
    %p172 = scmp.ne.s32.totalorder %s167, %s169
    %p173 = scmp.eq.s32.totalorder %s14, 0
    %p174 = por %p172, %p173
    %p175 = scmp.ne.s32.totalorder %s167, %s169
    %p176 = scmp.eq.s32.totalorder %s19, 1
    %p177 = por %p175, %p176
    %p178 = scmp.ne.s32.totalorder %s169, %s170
    %p179 = scmp.eq.s32.totalorder %s19, 0
    %p180 = por %p178, %p179
    %p181 = scmp.ne.s32.totalorder %s169, %s170
    %p182 = scmp.eq.s32.totalorder %s20, 1
    %p183 = por %p181, %p182
    %p185 = scmp.ne.s32.totalorder %s170, %s184
    %p186 = scmp.eq.s32.totalorder %s20, 0
    %p187 = por %p185, %p186
    %s189 = sadd.s32 %s188, 1
    %p192 = scmp.eq.s32.totalorder %s14, 1
    %p193 = scmp.ne.s32.totalorder %s188, %s190
    %p194 = scmp.eq.s32.totalorder %s14, 0
    %p195 = por %p193, %p194
    %p196 = scmp.ne.s32.totalorder %s188, %s190
    %p197 = scmp.eq.s32.totalorder %s19, 1
    %p198 = por %p196, %p197
    %p199 = scmp.ne.s32.totalorder %s190, %s191
    %p200 = scmp.eq.s32.totalorder %s19, 0
    %p201 = por %p199, %p200
    %p202 = scmp.ne.s32.totalorder %s190, %s191
    %p203 = scmp.eq.s32.totalorder %s20, 1
    %p204 = por %p202, %p203
    %p206 = scmp.ne.s32.totalorder %s191, %s205
    %p207 = scmp.eq.s32.totalorder %s20, 0
    %p208 = por %p206, %p207
    %s209 = ssub.s32 %s21, %s33
    %s210 = ssub.s32 %s22, %s29
    %s211 = sor.u32 %s209, %s210
    %p212 = scmp.eq.s32.totalorder %s211, 0
    %s214 = sadd.s32 %s213, 1
    %s215 = scalar_select %p212, %s213, %s214
    %p218 = pneg %p212
    %p219 = scmp.eq.s32.totalorder %s14, 1
    %p220 = por %p218, %p219
    %p221 = scmp.ne.s32.totalorder %s213, %s216
    %p222 = scmp.eq.s32.totalorder %s14, 0
    %p223 = por %p221, %p222
    %p224 = scmp.ne.s32.totalorder %s213, %s216
    %p225 = scmp.eq.s32.totalorder %s19, 1
    %p226 = por %p224, %p225
    %p227 = scmp.ne.s32.totalorder %s216, %s217
    %p228 = scmp.eq.s32.totalorder %s19, 0
    %p229 = por %p227, %p228
    %p230 = scmp.ne.s32.totalorder %s216, %s217
    %p231 = scmp.eq.s32.totalorder %s20, 1
    %p232 = por %p230, %p231
    %p234 = scmp.ne.s32.totalorder %s217, %s233
    %p235 = scmp.eq.s32.totalorder %s20, 0
    %p236 = por %p234, %p235
    %p237 = scmp.le.s32.totalorder 1, %s14
    %p238 = scmp.lt.s32.totalorder %s14, 3
    %p239 = pnand %p237, %p238
    %p240 = pneg %p239
    // Predicated region
    $region9: #{similarity_measure1_forward.1} parent=5 // pred_check
      _
    $region10: #{similarity_measure1_forward.1} parent=5 // pred_check_branch
      %242 = sbr.rel (%p239) target = $region12
    $region11: #{similarity_measure1_forward.1} parent=5 // pred_region
      %s243 = ssub.s32 %s14, 1
      // Predicated region
      $region13: #{similarity_measure1_forward.1} parent=11 // pred_check
        %p244 = pneg %p75
      $region14: #{similarity_measure1_forward.1} parent=11 // pred_check_branch
        %246 = sbr.rel (%p244) target = $region16
      $region15: #{similarity_measure1_forward.1} parent=11 // pred_region
        _
      $region16: #{similarity_measure1_forward.1} parent=11 // pred_fallthru
        _
      // Predicated region
      $region17: #{similarity_measure1_forward.1} parent=11 // pred_check
        %p247 = pneg %p96
      $region18: #{similarity_measure1_forward.1} parent=11 // pred_check_branch
        %249 = sbr.rel (%p247) target = $region20
      $region19: #{similarity_measure1_forward.1} parent=11 // pred_region
        _
      $region20: #{similarity_measure1_forward.1} parent=11 // pred_fallthru
        _
      // Predicated region
      $region21: #{similarity_measure1_forward.1} parent=11 // pred_check
        %p250 = pneg %p117
      $region22: #{similarity_measure1_forward.1} parent=11 // pred_check_branch
        %252 = sbr.rel (%p250) target = $region24
      $region23: #{similarity_measure1_forward.1} parent=11 // pred_region
        _
      $region24: #{similarity_measure1_forward.1} parent=11 // pred_fallthru
        _
      // Predicated region
      $region25: #{similarity_measure1_forward.1} parent=11 // pred_check
        %p253 = pneg %p138
      $region26: #{similarity_measure1_forward.1} parent=11 // pred_check_branch
        %255 = sbr.rel (%p253) target = $region28
      $region27: #{similarity_measure1_forward.1} parent=11 // pred_region
        _
      $region28: #{similarity_measure1_forward.1} parent=11 // pred_fallthru
        _
      // Predicated region
      $region29: #{similarity_measure1_forward.1} parent=11 // pred_check
        %p256 = pneg %p159
      $region30: #{similarity_measure1_forward.1} parent=11 // pred_check_branch
        %258 = sbr.rel (%p256) target = $region32
      $region31: #{similarity_measure1_forward.1} parent=11 // pred_region
        _
      $region32: #{similarity_measure1_forward.1} parent=11 // pred_fallthru
        _
      // Predicated region
      $region33: #{similarity_measure1_forward.1} parent=11 // pred_check
        %p259 = pneg %p180
      $region34: #{similarity_measure1_forward.1} parent=11 // pred_check_branch
        %261 = sbr.rel (%p259) target = $region36
      $region35: #{similarity_measure1_forward.1} parent=11 // pred_region
        _
      $region36: #{similarity_measure1_forward.1} parent=11 // pred_fallthru
        _
      // Predicated region
      $region37: #{similarity_measure1_forward.1} parent=11 // pred_check
        %p262 = pneg %p201
      $region38: #{similarity_measure1_forward.1} parent=11 // pred_check_branch
        %264 = sbr.rel (%p262) target = $region40
      $region39: #{similarity_measure1_forward.1} parent=11 // pred_region
        _
      $region40: #{similarity_measure1_forward.1} parent=11 // pred_fallthru
        _
    $region12: #{similarity_measure1_forward.1} parent=5 // pred_fallthru
      _
    %p265 = scmp.lt.s32.totalorder %s14, 2
    // Predicated region
    $region41: #{similarity_measure1_forward.1} parent=5 // pred_check
      %p266 = pneg %p265
    $region42: #{similarity_measure1_forward.1} parent=5 // pred_check_branch
      %268 = sbr.rel (%p266) target = $region44
    $region43: #{similarity_measure1_forward.1} parent=5 // pred_region
      // Predicated region
      $region45: #{similarity_measure1_forward.1} parent=43 // pred_check
        %p269 = pneg %p48
      $region46: #{similarity_measure1_forward.1} parent=43 // pred_check_branch
        %271 = sbr.rel (%p269) target = $region48
      $region47: #{similarity_measure1_forward.1} parent=43 // pred_region
        %s272 = smul.u32 2, %s22
        %p273 = scmp.lt.s32.totalorder %s21, 1
        %s274 = scalar_select %p273, %s21, 1
        %p275 = scmp.lt.s32.totalorder %s272, 1
        %s276 = scalar_select %p275, %s272, 1
        %s277 = smul.addr %s274, 16
        %s278 = sadd.s32 %s276, %s277
        %s279 = smul.addr %s278, 8
        %s280 = scalar_lea.vmem %s0, %s279
        %s281 = smul.u32 2, %s22
      $region48: #{similarity_measure1_forward.1} parent=43 // pred_fallthru
        _
    $region44: #{similarity_measure1_forward.1} parent=5 // pred_fallthru
      _
    %p282 = scmp.le.s32.totalorder 1, %s14
    %p283 = scmp.lt.s32.totalorder %s14, 3
    %p284 = pnand %p282, %p283
    %p285 = pneg %p284
    // Predicated region
    $region49: #{similarity_measure1_forward.1} parent=5 // pred_check
      _
    $region50: #{similarity_measure1_forward.1} parent=5 // pred_check_branch
      %287 = sbr.rel (%p284) target = $region52
    $region51: #{similarity_measure1_forward.1} parent=5 // pred_region
      %s288 = ssub.s32 %s14, 1
      %s289 = smul.u32 2, %s24
      %p290 = scmp.lt.s32.totalorder %s23, 1
      %s291 = scalar_select %p290, %s23, 1
      %p292 = scmp.lt.s32.totalorder %s289, 1
      %s293 = scalar_select %p292, %s289, 1
      %s294 = smul.addr %s291, 16
      %s295 = sadd.s32 %s293, %s294
      %s296 = smul.addr %s295, 8
      %s297 = scalar_lea.vmem %s0, %s296
      %p298 = pneg %p54
      %p299 = pneg %p51
      %p300 = pneg %p75
      %p301 = pneg %p72
      %p302 = pneg %p96
      %p303 = pneg %p93
      %p304 = pneg %p117
      %p305 = pneg %p114
      %p306 = pneg %p138
      %p307 = pneg %p135
      %p308 = pneg %p159
      %p309 = pneg %p156
      %p310 = pneg %p180
      %p311 = pneg %p177
      %p312 = pneg %p201
      %p313 = pneg %p198
      %p314 = pneg %p229
      %p315 = pneg %p226
      %s316 = smul.u32 2, %s24
      %p317 = scmp.lt.s32.totalorder %s23, 1
      %s318 = scalar_select %p317, %s23, 1
      %p319 = scmp.lt.s32.totalorder %s316, 1
      %s320 = scalar_select %p319, %s316, 1
      %s321 = smul.addr %s318, 2
      %s322 = sadd.s32 %s320, %s321
      %s323 = scalar_lea.vmem %s8, %s322
      %s324 = smul.u32 2, %s24
      %p325 = scmp.lt.s32.totalorder %s23, 1
      %s326 = scalar_select %p325, %s23, 1
      %p327 = scmp.lt.s32.totalorder %s324, 1
      %s328 = scalar_select %p327, %s324, 1
      %s329 = smul.addr %s326, 16
      %s330 = sadd.s32 %s328, %s329
      %s331 = smul.addr %s330, 8
      %s332 = scalar_lea.vmem %s0, %s331
      %s333 = smul.u32 2, %s24
      %s334 = smul.u32 2, %s24
      %p335 = scmp.lt.s32.totalorder %s23, 1
      %s336 = scalar_select %p335, %s23, 1
      %p337 = scmp.lt.s32.totalorder %s334, 1
      %s338 = scalar_select %p337, %s334, 1
      %s339 = smul.addr %s336, 2
      %s340 = sadd.s32 %s338, %s339
      %s341 = scalar_lea.vmem %s8, %s340
      %s342 = smul.u32 2, %s24
      %v344 = vld [vmem:[%s332] sm:$0xff]
      %v345 = vld [vmem:[%s332 + $0x8] sm:$0xff]
      %v346 = vld [vmem:[%s332 + $0x10] sm:$0xff]
      %v347 = vld [vmem:[%s332 + $0x18] sm:$0xff]
      %v348 = vld [vmem:[%s332 + $0x20] sm:$0xff]
      %v349 = vld [vmem:[%s332 + $0x28] sm:$0xff]
      %v350 = vld [vmem:[%s332 + $0x30] sm:$0xff]
      %v351 = vld [vmem:[%s332 + $0x38] sm:$0xff]
      %v352 = vld [vmem:[%s332 + $0x40] sm:$0xff]
      %v353 = vld [vmem:[%s332 + $0x48] sm:$0xff]
      %v354 = vld [vmem:[%s332 + $0x50] sm:$0xff]
      %v355 = vld [vmem:[%s332 + $0x58] sm:$0xff]
      %v356 = vld [vmem:[%s332 + $0x60] sm:$0xff]
      %v357 = vld [vmem:[%s332 + $0x68] sm:$0xff]
      %v358 = vld [vmem:[%s332 + $0x70] sm:$0xff]
      %v359 = vld [vmem:[%s332 + $0x78] sm:$0xff]
      %v360 = vpack.c.bf16 %v346, %v344
      %v361 = vpack.c.bf16 %v347, %v345
      %v362 = vpack.c.bf16 %v350, %v348
      %v363 = vpack.c.bf16 %v351, %v349
      %v364 = vpack.c.bf16 %v354, %v352
      %v365 = vpack.c.bf16 %v355, %v353
      %v366 = vpack.c.bf16 %v358, %v356
      %v367 = vpack.c.bf16 %v359, %v357
      %v368 = vld [vmem:[%s1] sm:$0xf]
      %v369 = vld [vmem:[%s1 + $0x4] sm:$0xf]
      %v370 = vld [vmem:[%s1 + $0x8] sm:$0xf]
      %v371 = vld [vmem:[%s1 + $0xc] sm:$0xf]
      %v376 = vunpack.c.l.b16 %v368
      %v377 = vunpack.c.l.b16 %v369
      %v378 = vunpack.c.l.b16 %v370
      %v379 = vunpack.c.l.b16 %v371
      %v380 = vpack.c.b16 %v377, %v376
      %v381 = vpack.c.b16 %v379, %v378
      %vm382 = vcmask 523264
      %v384 = vsel %vm382, %v380, 0
      %v387 = vsel %vm382, %v381, 0
      %389 = vmatpush.bf16.msra.mxu0 0
      %390 = vmatpush.bf16.msra.mxu0 0
      %391 = vmatpush.bf16.msra.mxu0 0
      %392 = vmatpush.bf16.msra.mxu0 0
      %393 = vmatpush.bf16.msra.mxu0 %v366
      %394 = vmatpush.bf16.msra.mxu0 %v364
      %395 = vmatpush.bf16.msra.mxu0 %v362
      %396 = vmatpush.bf16.msra.mxu0 %v360
      %397 = vmatmul.bf16.gmra.mxu0 %v384
      %v398 = vpop.f32.mrf.mxu0
      %v399 = vadd.f32 0.0, %v398
      %v400 = vpop.f32.mrf.mxu0
      %v401 = vadd.f32 0.0, %v400
      %402 = vmatmul.bf16.gmra.mxu0 %v387
      %v403 = vpop.f32.mrf.mxu0
      %v404 = vadd.f32 0.0, %v403
      %v405 = vpop.f32.mrf.mxu0
      %v406 = vadd.f32 0.0, %v405
      %407 = vdwg.mxu0
      %408 = vmatpush.bf16.msra.mxu0 0
      %409 = vmatpush.bf16.msra.mxu0 0
      %410 = vmatpush.bf16.msra.mxu0 0
      %411 = vmatpush.bf16.msra.mxu0 0
      %412 = vmatpush.bf16.msra.mxu0 %v367
      %413 = vmatpush.bf16.msra.mxu0 %v365
      %414 = vmatpush.bf16.msra.mxu0 %v363
      %415 = vmatpush.bf16.msra.mxu0 %v361
      %416 = vmatmul.bf16.gmra.mxu0 %v384
      %v417 = vpop.f32.mrf.mxu0
      %v418 = vadd.f32 0.0, %v417
      %v419 = vpop.f32.mrf.mxu0
      %v420 = vadd.f32 0.0, %v419
      %421 = vmatmul.bf16.gmra.mxu0 %v387
      %v422 = vpop.f32.mrf.mxu0
      %v423 = vadd.f32 0.0, %v422
      %v424 = vpop.f32.mrf.mxu0
      %v425 = vadd.f32 0.0, %v424
      %426 = vdwg.mxu0
      %v427 = vpack.c.bf16 %v418, %v399
      %v428 = vpack.c.bf16 %v420, %v401
      %v429 = vpack.c.bf16 %v423, %v404
      %v430 = vpack.c.bf16 %v425, %v406
      %v431 = vunpack.c.l.bf16 %v427
      %v432 = vunpack.c.h.bf16 %v427
      %v433 = vunpack.c.l.bf16 %v428
      %v434 = vunpack.c.h.bf16 %v428
      %v435 = vunpack.c.l.bf16 %v429
      %v436 = vunpack.c.h.bf16 %v429
      %v437 = vunpack.c.l.bf16 %v430
      %v438 = vunpack.c.h.bf16 %v430
      %v439 = vmul.f32 %v431, 0.010009766
      %v440 = vmul.f32 %v432, 0.010009766
      %v441 = vmul.f32 %v433, 0.010009766
      %v442 = vmul.f32 %v434, 0.010009766
      %v443 = vmul.f32 %v435, 0.010009766
      %v444 = vmul.f32 %v436, 0.010009766
      %v445 = vmul.f32 %v437, 0.010009766
      %v446 = vmul.f32 %v438, 0.010009766
      %v447 = vpack.c.bf16 %v440, %v439
      %v448 = vpack.c.bf16 %v442, %v441
      %v449 = vpack.c.bf16 %v444, %v443
      %v450 = vpack.c.bf16 %v446, %v445
      %v451 = vunpack.c.l.bf16 %v447
      %v452 = vunpack.c.h.bf16 %v447
      %v453 = vunpack.c.l.bf16 %v448
      %v454 = vunpack.c.h.bf16 %v448
      %v455 = vunpack.c.l.bf16 %v449
      %v456 = vunpack.c.h.bf16 %v449
      %v457 = vunpack.c.l.bf16 %v450
      %v458 = vunpack.c.h.bf16 %v450
      %v459 = vmax.f32 %v431, %v451
      %v460 = vmax.f32 %v432, %v452
      %v461 = vmax.f32 %v433, %v453
      %v462 = vmax.f32 %v434, %v454
      %v463 = vmax.f32 %v435, %v455
      %v464 = vmax.f32 %v436, %v456
      %v465 = vmax.f32 %v437, %v457
      %v466 = vmax.f32 %v438, %v458
      %v467 = vpack.c.bf16 %v461, %v459
      %v468 = vpack.c.bf16 %v462, %v460
      %v469 = vpack.c.bf16 %v465, %v463
      %v470 = vpack.c.bf16 %v466, %v464
      %v471 = vld [vmem:[%s2] sm:$0xf]
      %v472 = vld [vmem:[%s2 + $0x4] sm:$0xf]
      %v475 = vunpack.c.l.b16 %v471
      %v476 = vunpack.c.l.b16 %v472
      %v477 = vpack.c.b16 %v476, %v475
      %vm478 = vcmask 261120
      %v480 = vsel %vm478, %v477, 0
      %482 = vmatpush.bf16.msra.mxu0 0
      %483 = vmatpush.bf16.msra.mxu0 0
      %484 = vmatpush.bf16.msra.mxu0 0
      %485 = vmatpush.bf16.msra.mxu0 0
      %486 = vmatpush.bf16.msra.mxu0 0
      %487 = vmatpush.bf16.msra.mxu0 0
      %488 = vmatpush.bf16.msra.mxu0 %v469
      %489 = vmatpush.bf16.msra.mxu0 %v467
      %490 = vmatmul.bf16.gmra.mxu0 %v480
      %v491 = vpop.f32.mrf.mxu0
      %v492 = vadd.f32 0.0, %v491
      %v493 = vpop.f32.mrf.mxu0
      %v494 = vadd.f32 0.0, %v493
      %495 = vdwg.mxu0
      %496 = vmatpush.bf16.msra.mxu0 0
      %497 = vmatpush.bf16.msra.mxu0 0
      %498 = vmatpush.bf16.msra.mxu0 0
      %499 = vmatpush.bf16.msra.mxu0 0
      %500 = vmatpush.bf16.msra.mxu0 0
      %501 = vmatpush.bf16.msra.mxu0 0
      %502 = vmatpush.bf16.msra.mxu0 %v470
      %503 = vmatpush.bf16.msra.mxu0 %v468
      %504 = vmatmul.bf16.gmra.mxu0 %v480
      %v505 = vpop.f32.mrf.mxu0
      %v506 = vadd.f32 0.0, %v505
      %v507 = vpop.f32.mrf.mxu0
      %v508 = vadd.f32 0.0, %v507
      %509 = vdwg.mxu0
      %v510 = vpack.c.bf16 %v506, %v492
      %v511 = vpack.c.bf16 %v508, %v494
      %v512 = vunpack.c.l.bf16 %v510
      %v513 = vunpack.c.h.bf16 %v510
      %v514 = vunpack.c.l.bf16 %v511
      %v515 = vunpack.c.h.bf16 %v511
      %v516 = vmul.f32 %v512, 0.010009766
      %v517 = vmul.f32 %v513, 0.010009766
      %v518 = vmul.f32 %v514, 0.010009766
      %v519 = vmul.f32 %v515, 0.010009766
      %v520 = vpack.c.bf16 %v517, %v516
      %v521 = vpack.c.bf16 %v519, %v518
      %v522 = vunpack.c.l.bf16 %v520
      %v523 = vunpack.c.h.bf16 %v520
      %v524 = vunpack.c.l.bf16 %v521
      %v525 = vunpack.c.h.bf16 %v521
      %v526 = vmax.f32 %v512, %v522
      %v527 = vmax.f32 %v513, %v523
      %v528 = vmax.f32 %v514, %v524
      %v529 = vmax.f32 %v515, %v525
      %v530 = vpack.c.bf16 %v528, %v526
      %v531 = vpack.c.bf16 %v529, %v527
      %v532 = vld [vmem:[%s3] sm:$0xf]
      %v533 = vld [vmem:[%s3 + $0x4] sm:$0xf]
      %v536 = vunpack.c.l.b16 %v532
      %v537 = vunpack.c.l.b16 %v533
      %v538 = vpack.c.b16 %v537, %v536
      %vm539 = vcmask 130048
      %v541 = vsel %vm539, %v538, 0
      %543 = vmatpush.bf16.msra.mxu0 0
      %544 = vmatpush.bf16.msra.mxu0 0
      %545 = vmatpush.bf16.msra.mxu0 0
      %546 = vmatpush.bf16.msra.mxu0 0
      %547 = vmatpush.bf16.msra.mxu0 0
      %548 = vmatpush.bf16.msra.mxu0 0
      %549 = vmatpush.bf16.msra.mxu0 0
      %550 = vmatpush.bf16.msra.mxu0 %v530
      %551 = vmatmul.bf16.gmra.mxu0 %v541
      %v552 = vpop.f32.mrf.mxu0
      %v553 = vadd.f32 0.0, %v552
      %v554 = vpop.f32.mrf.mxu0
      %v555 = vadd.f32 0.0, %v554
      %556 = vdwg.mxu0
      %557 = vmatpush.bf16.msra.mxu0 0
      %558 = vmatpush.bf16.msra.mxu0 0
      %559 = vmatpush.bf16.msra.mxu0 0
      %560 = vmatpush.bf16.msra.mxu0 0
      %561 = vmatpush.bf16.msra.mxu0 0
      %562 = vmatpush.bf16.msra.mxu0 0
      %563 = vmatpush.bf16.msra.mxu0 0
      %564 = vmatpush.bf16.msra.mxu0 %v531
      %565 = vmatmul.bf16.gmra.mxu0 %v541
      %v566 = vpop.f32.mrf.mxu0
      %v567 = vadd.f32 0.0, %v566
      %v568 = vpop.f32.mrf.mxu0
      %v569 = vadd.f32 0.0, %v568
      %570 = vdwg.mxu0
      %v571 = vpack.c.bf16 %v567, %v553
      %v572 = vpack.c.bf16 %v569, %v555
      %v573 = vunpack.c.l.bf16 %v571
      %v574 = vunpack.c.h.bf16 %v571
      %v575 = vunpack.c.l.bf16 %v572
      %v576 = vunpack.c.h.bf16 %v572
      %v577 = vmul.f32 %v573, 0.010009766
      %v578 = vmul.f32 %v574, 0.010009766
      %v579 = vmul.f32 %v575, 0.010009766
      %v580 = vmul.f32 %v576, 0.010009766
      %v581 = vpack.c.bf16 %v578, %v577
      %v582 = vpack.c.bf16 %v580, %v579
      %v583 = vunpack.c.l.bf16 %v581
      %v584 = vunpack.c.h.bf16 %v581
      %v585 = vunpack.c.l.bf16 %v582
      %v586 = vunpack.c.h.bf16 %v582
      %v587 = vmax.f32 %v573, %v583
      %v588 = vmax.f32 %v574, %v584
      %v589 = vmax.f32 %v575, %v585
      %v590 = vmax.f32 %v576, %v586
      %v591 = vpack.c.bf16 %v589, %v587
      %v592 = vpack.c.bf16 %v590, %v588
      %v593 = vld [vmem:[%s4] sm:$0xf]
      %v594 = vld [vmem:[%s4 + $0x4] sm:$0xf]
      %v597 = vunpack.c.l.b16 %v593
      %v598 = vunpack.c.l.b16 %v594
      %v599 = vpack.c.b16 %v598, %v597
      %v601 = vsel %vm539, %v599, 0
      %603 = vmatpush.bf16.msra.mxu0 0
      %604 = vmatpush.bf16.msra.mxu0 0
      %605 = vmatpush.bf16.msra.mxu0 0
      %606 = vmatpush.bf16.msra.mxu0 0
      %607 = vmatpush.bf16.msra.mxu0 0
      %608 = vmatpush.bf16.msra.mxu0 0
      %609 = vmatpush.bf16.msra.mxu0 0
      %610 = vmatpush.bf16.msra.mxu0 %v591
      %611 = vmatmul.bf16.gmra.mxu0 %v601
      %v612 = vpop.f32.mrf.mxu0
      %v613 = vadd.f32 0.0, %v612
      %v614 = vpop.f32.mrf.mxu0
      %v615 = vadd.f32 0.0, %v614
      %616 = vdwg.mxu0
      %617 = vmatpush.bf16.msra.mxu0 0
      %618 = vmatpush.bf16.msra.mxu0 0
      %619 = vmatpush.bf16.msra.mxu0 0
      %620 = vmatpush.bf16.msra.mxu0 0
      %621 = vmatpush.bf16.msra.mxu0 0
      %622 = vmatpush.bf16.msra.mxu0 0
      %623 = vmatpush.bf16.msra.mxu0 0
      %624 = vmatpush.bf16.msra.mxu0 %v592
      %625 = vmatmul.bf16.gmra.mxu0 %v601
      %v626 = vpop.f32.mrf.mxu0
      %v627 = vadd.f32 0.0, %v626
      %v628 = vpop.f32.mrf.mxu0
      %v629 = vadd.f32 0.0, %v628
      %630 = vdwg.mxu0
      %v631 = vpack.c.bf16 %v627, %v613
      %v632 = vpack.c.bf16 %v629, %v615
      %v633 = vunpack.c.l.bf16 %v631
      %v634 = vunpack.c.h.bf16 %v631
      %v635 = vunpack.c.l.bf16 %v632
      %v636 = vunpack.c.h.bf16 %v632
      %v637 = vmul.f32 %v633, 0.010009766
      %v638 = vmul.f32 %v634, 0.010009766
      %v639 = vmul.f32 %v635, 0.010009766
      %v640 = vmul.f32 %v636, 0.010009766
      %v641 = vpack.c.bf16 %v638, %v637
      %v642 = vpack.c.bf16 %v640, %v639
      %v643 = vunpack.c.l.bf16 %v641
      %v644 = vunpack.c.h.bf16 %v641
      %v645 = vunpack.c.l.bf16 %v642
      %v646 = vunpack.c.h.bf16 %v642
      %v647 = vmax.f32 %v633, %v643
      %v648 = vmax.f32 %v634, %v644
      %v649 = vmax.f32 %v635, %v645
      %v650 = vmax.f32 %v636, %v646
      %v651 = vpack.c.bf16 %v649, %v647
      %v652 = vpack.c.bf16 %v650, %v648
      %v653 = vld [vmem:[%s5] sm:$0xf]
      %v654 = vld [vmem:[%s5 + $0x4] sm:$0xf]
      %v657 = vunpack.c.l.b16 %v653
      %v658 = vunpack.c.l.b16 %v654
      %v659 = vpack.c.b16 %v658, %v657
      %v661 = vsel %vm539, %v659, 0
      %663 = vmatpush.bf16.msra.mxu0 0
      %664 = vmatpush.bf16.msra.mxu0 0
      %665 = vmatpush.bf16.msra.mxu0 0
      %666 = vmatpush.bf16.msra.mxu0 0
      %667 = vmatpush.bf16.msra.mxu0 0
      %668 = vmatpush.bf16.msra.mxu0 0
      %669 = vmatpush.bf16.msra.mxu0 0
      %670 = vmatpush.bf16.msra.mxu0 %v651
      %671 = vmatmul.bf16.gmra.mxu0 %v661
      %v672 = vpop.f32.mrf.mxu0
      %v673 = vadd.f32 0.0, %v672
      %v674 = vpop.f32.mrf.mxu0
      %v675 = vadd.f32 0.0, %v674
      %676 = vdwg.mxu0
      %677 = vmatpush.bf16.msra.mxu0 0
      %678 = vmatpush.bf16.msra.mxu0 0
      %679 = vmatpush.bf16.msra.mxu0 0
      %680 = vmatpush.bf16.msra.mxu0 0
      %681 = vmatpush.bf16.msra.mxu0 0
      %682 = vmatpush.bf16.msra.mxu0 0
      %683 = vmatpush.bf16.msra.mxu0 0
      %684 = vmatpush.bf16.msra.mxu0 %v652
      %685 = vmatmul.bf16.gmra.mxu0 %v661
      %v686 = vpop.f32.mrf.mxu0
      %v687 = vadd.f32 0.0, %v686
      %v688 = vpop.f32.mrf.mxu0
      %v689 = vadd.f32 0.0, %v688
      %690 = vdwg.mxu0
      %v691 = vpack.c.bf16 %v687, %v673
      %v692 = vpack.c.bf16 %v689, %v675
      %v693 = vunpack.c.l.bf16 %v691
      %v694 = vunpack.c.h.bf16 %v691
      %v695 = vunpack.c.l.bf16 %v692
      %v696 = vunpack.c.h.bf16 %v692
      %v697 = vmul.f32 %v693, 0.010009766
      %v698 = vmul.f32 %v694, 0.010009766
      %v699 = vmul.f32 %v695, 0.010009766
      %v700 = vmul.f32 %v696, 0.010009766
      %v701 = vpack.c.bf16 %v698, %v697
      %v702 = vpack.c.bf16 %v700, %v699
      %v703 = vunpack.c.l.bf16 %v701
      %v704 = vunpack.c.h.bf16 %v701
      %v705 = vunpack.c.l.bf16 %v702
      %v706 = vunpack.c.h.bf16 %v702
      %v707 = vmax.f32 %v693, %v703
      %v708 = vmax.f32 %v694, %v704
      %v709 = vmax.f32 %v695, %v705
      %v710 = vmax.f32 %v696, %v706
      %v711 = vpack.c.bf16 %v709, %v707
      %v712 = vpack.c.bf16 %v710, %v708
      %v713 = vld [vmem:[%s6] sm:$0xf]
      %v714 = vld [vmem:[%s6 + $0x4] sm:$0xf]
      %v717 = vunpack.c.l.b16 %v713
      %v718 = vunpack.c.l.b16 %v714
      %v719 = vpack.c.b16 %v718, %v717
      %v721 = vsel %vm539, %v719, 0
      %723 = vmatpush.bf16.msra.mxu0 0
      %724 = vmatpush.bf16.msra.mxu0 0
      %725 = vmatpush.bf16.msra.mxu0 0
      %726 = vmatpush.bf16.msra.mxu0 0
      %727 = vmatpush.bf16.msra.mxu0 0
      %728 = vmatpush.bf16.msra.mxu0 0
      %729 = vmatpush.bf16.msra.mxu0 0
      %730 = vmatpush.bf16.msra.mxu0 %v711
      %731 = vmatmul.bf16.gmra.mxu0 %v721
      %v732 = vpop.f32.mrf.mxu0
      %v733 = vadd.f32 0.0, %v732
      %v734 = vpop.f32.mrf.mxu0
      %v735 = vadd.f32 0.0, %v734
      %736 = vdwg.mxu0
      %737 = vmatpush.bf16.msra.mxu0 0
      %738 = vmatpush.bf16.msra.mxu0 0
      %739 = vmatpush.bf16.msra.mxu0 0
      %740 = vmatpush.bf16.msra.mxu0 0
      %741 = vmatpush.bf16.msra.mxu0 0
      %742 = vmatpush.bf16.msra.mxu0 0
      %743 = vmatpush.bf16.msra.mxu0 0
      %744 = vmatpush.bf16.msra.mxu0 %v712
      %745 = vmatmul.bf16.gmra.mxu0 %v721
      %v746 = vpop.f32.mrf.mxu0
      %v747 = vadd.f32 0.0, %v746
      %v748 = vpop.f32.mrf.mxu0
      %v749 = vadd.f32 0.0, %v748
      %750 = vdwg.mxu0
      %v751 = vpack.c.bf16 %v747, %v733
      %v752 = vpack.c.bf16 %v749, %v735
      %v753 = vunpack.c.l.bf16 %v751
      %v754 = vunpack.c.h.bf16 %v751
      %v755 = vunpack.c.l.bf16 %v752
      %v756 = vunpack.c.h.bf16 %v752
      %v757 = vmul.f32 %v753, 0.010009766
      %v758 = vmul.f32 %v754, 0.010009766
      %v759 = vmul.f32 %v755, 0.010009766
      %v760 = vmul.f32 %v756, 0.010009766
      %v761 = vpack.c.bf16 %v758, %v757
      %v762 = vpack.c.bf16 %v760, %v759
      %v763 = vunpack.c.l.bf16 %v761
      %v764 = vunpack.c.h.bf16 %v761
      %v765 = vunpack.c.l.bf16 %v762
      %v766 = vunpack.c.h.bf16 %v762
      %v767 = vmax.f32 %v753, %v763
      %v768 = vmax.f32 %v754, %v764
      %v769 = vmax.f32 %v755, %v765
      %v770 = vmax.f32 %v756, %v766
      %v771 = vpack.c.bf16 %v769, %v767
      %v772 = vpack.c.bf16 %v770, %v768
      %v773 = vld [vmem:[%s7] sm:$0xf]
      %v774 = vld [vmem:[%s7 + $0x4] sm:$0xf]
      %v777 = vunpack.c.l.b16 %v773
      %v778 = vunpack.c.l.b16 %v774
      %v779 = vpack.c.b16 %v778, %v777
      %v781 = vsel %vm539, %v779, 0
      %783 = vmatpush.bf16.msra.mxu0 0
      %784 = vmatpush.bf16.msra.mxu0 0
      %785 = vmatpush.bf16.msra.mxu0 0
      %786 = vmatpush.bf16.msra.mxu0 0
      %787 = vmatpush.bf16.msra.mxu0 0
      %788 = vmatpush.bf16.msra.mxu0 0
      %789 = vmatpush.bf16.msra.mxu0 0
      %790 = vmatpush.bf16.msra.mxu0 %v771
      %791 = vmatmul.bf16.gmra.mxu0 %v781
      %v792 = vpop.f32.mrf.mxu0
      %v793 = vadd.f32 0.0, %v792
      %v794 = vpop.f32.mrf.mxu0
      %795 = vdwg.mxu0
      %796 = vmatpush.bf16.msra.mxu0 0
      %797 = vmatpush.bf16.msra.mxu0 0
      %798 = vmatpush.bf16.msra.mxu0 0
      %799 = vmatpush.bf16.msra.mxu0 0
      %800 = vmatpush.bf16.msra.mxu0 0
      %801 = vmatpush.bf16.msra.mxu0 0
      %802 = vmatpush.bf16.msra.mxu0 0
      %803 = vmatpush.bf16.msra.mxu0 %v772
      %804 = vmatmul.bf16.gmra.mxu0 %v781
      %v805 = vpop.f32.mrf.mxu0
      %v806 = vadd.f32 0.0, %v805
      %v807 = vpop.f32.mrf.mxu0
      %808 = vdwg.mxu0
      %v811 = vrot.slane %v806, 7
      %vm812 = vcmask 1040384
      %v813 = vsel %vm812, %v793, %v811
      %v815 = vlaneseq
      %vm816 = vcmp.ge.s32.totalorder %v815, 0
      %vm817 = vcmp.lt.s32.totalorder %v815, 256
      %vm818 = vmand %vm816, %vm817
      %819 = vst.msk [vmem:[%s341] sm:$0x3] %vm818, %v813
      %s820 = smul.u32 2, %s24
      %p821 = scmp.lt.s32.totalorder %s23, 1
      %s822 = scalar_select %p821, %s23, 1
      %p823 = scmp.lt.s32.totalorder %s820, 1
      %s824 = scalar_select %p823, %s820, 1
      %s825 = smul.addr %s822, 2
      %s826 = sadd.s32 %s824, %s825
      %s827 = scalar_lea.vmem %s8, %s826
      // Predicated region
      $region53: #{similarity_measure1_forward.1} parent=51 // pred_check
        %p828 = pneg %p226
      $region54: #{similarity_measure1_forward.1} parent=51 // pred_check_branch
        %830 = sbr.rel (%p828) target = $region56
      $region55: #{similarity_measure1_forward.1} parent=51 // pred_region
        %s831 = smul.u32 2, %s24
      $region56: #{similarity_measure1_forward.1} parent=51 // pred_fallthru
        _
    $region52: #{similarity_measure1_forward.1} parent=5 // pred_fallthru
      _
    %p832 = scmp.le.s32.totalorder 2, %s14
    // Predicated region
    $region57: #{similarity_measure1_forward.1} parent=5 // pred_check
      %p833 = pneg %p832
    $region58: #{similarity_measure1_forward.1} parent=5 // pred_check_branch
      %835 = sbr.rel (%p833) target = $region60
    $region59: #{similarity_measure1_forward.1} parent=5 // pred_region
      %s836 = ssub.s32 %s14, 2
      // Predicated region
      $region61: #{similarity_measure1_forward.1} parent=59 // pred_check
        %p837 = pneg %p232
      $region62: #{similarity_measure1_forward.1} parent=59 // pred_check_branch
        %839 = sbr.rel (%p837) target = $region64
      $region63: #{similarity_measure1_forward.1} parent=59 // pred_region
        %s840 = smul.u32 2, %s26
        %p841 = scmp.lt.s32.totalorder %s25, 1
        %s842 = scalar_select %p841, %s25, 1
        %p843 = scmp.lt.s32.totalorder %s840, 1
        %s844 = scalar_select %p843, %s840, 1
        %s845 = smul.addr %s842, 2
        %s846 = sadd.s32 %s844, %s845
        %s847 = scalar_lea.vmem %s8, %s846
      $region64: #{similarity_measure1_forward.1} parent=59 // pred_fallthru
        _
    $region60: #{similarity_measure1_forward.1} parent=5 // pred_fallthru
      _
  $region6: #{similarity_measure1_forward.1} parent=0 // loop_footer
    %s18 = sadd.s32 1, %s14
  $region7: #{similarity_measure1_forward.1} parent=0 // loop_footer_branch
    %13 = sbr.rel target = $region3
  $region8: #{similarity_measure1_forward.1} parent=0 // loop_exit
    _

</llo_original>
